<compile_context>
chip_gen: v7x
topology: tpu7x:2x2x1
jax: 0.10.0
libtpu: 0.0.40
codegen_flags: <defaults>
</compile_context>

<pallas_src>
import numpy as np
import jax
import jax.numpy as jnp
from jax.experimental import pallas as pl
from jax.experimental.pallas import tpu as pltpu

DIM = 69            # SMPL body-pose dimension
DPAD = 128          # lane-padded per-gaussian column block
NUM_GAUSSIANS = 6


# --------------------------------------------------------------------------- #
# Kernel
# --------------------------------------------------------------------------- #
def gmm_prior_kernel(x_ref, l_ref, c_ref, bias_ref, out_ref):
    """Per batch tile:
         ll_m[b] = 0.5 * sum_i (x[b] @ L_m - c_m)_i^2 + bias_m
         out[b]  = min_m ll_m[b]
       with L_m the Cholesky factor of sym(P_m), c_m = mu_m @ L_m and
       bias_m = -log(nll_weights_m) held in SMEM.
    """
    x = x_ref[...]                                       # (TB, D) f32, stays resident
    num_g = c_ref.shape[1] // DPAD

    def component_lls(g, width):
        lo = g * DPAD
        hi = (g + width) * DPAD
        # (TB, D) @ (D, width*128): one MXU pass, K=69 is padded/masked by the compiler.
        y = jax.lax.dot_general(
            x, l_ref[:, lo:hi],
            dimension_numbers=(((1,), (0,)), ((), ())),
            preferred_element_type=jnp.float32)          # (TB, width*128)
        y = y - c_ref[:, lo:hi]                          # broadcast (1, width*128)
        sq = y * y
        lls = []
        for k in range(width):
            s = jnp.sum(sq[:, k * DPAD:(k + 1) * DPAD], axis=-1, keepdims=True)
            lls.append(0.5 * s + bias_ref[g + k])        # SMEM scalar bias
        return lls

    # Static unrolled loop over gaussians, two at a time (last one alone if M is odd).
    min_ll = None
    g = 0
    while g < num_g:
        width = 2 if g + 1 < num_g else 1
        for ll in component_lls(g, width):
            min_ll = ll if min_ll is None else jnp.minimum(min_ll, ll)
        g += width

    out_ref[...] = min_ll                                # (TB, 1)


# --------------------------------------------------------------------------- #
# Host-side parameter packing (done once, outside the kernel)
# --------------------------------------------------------------------------- #
def pack_whitened_params(means, precisions, nll_weights, dpad=DPAD):
    """Whitening form of 0.5*(x-mu)^T P (x-mu) - log(w):
         ll_m = 0.5 * || x @ L_m - mu_m @ L_m ||^2 - log(w_m),  sym(P_m) = L_m L_m^T.
       The quadratic form only depends on the symmetric part of P, so symmetrising
       before the Cholesky keeps the result exact (up to float rounding)."""
    means = jnp.asarray(means, jnp.float32)                    # (M, D)
    precisions = jnp.asarray(precisions, jnp.float32)          # (M, D, D)
    nll_w = jnp.asarray(nll_weights, jnp.float32).reshape(-1)  # (M,), must be > 0

    M, D = means.shape
    p_sym = 0.5 * (precisions + jnp.swapaxes(precisions, -1, -2))
    chol = jnp.linalg.cholesky(p_sym)                          # (M, D, D), lower

    c = jnp.einsum('mj,mji->mi', means, chol)                  # mu_m @ L_m   (M, D)

    # (M, D, dpad) -> (D, M*dpad); l_packed[:, m*dpad : m*dpad+D] == L_m, rest zero.
    l_pad = jnp.zeros((M, D, dpad), jnp.float32).at[:, :, :D].set(chol)
    l_packed = jnp.transpose(l_pad, (1, 0, 2)).reshape(D, M * dpad)

    # Row of mu@L constants, lane-aligned per gaussian (padding lanes stay 0 so they
    # contribute nothing to the sum of squares).
    c_packed = jnp.zeros((M, dpad), jnp.float32).at[:, :D].set(c).reshape(1, M * dpad)

    bias = -jnp.log(nll_w)                                     # (M,) SMEM scalars
    return l_packed, c_packed, bias


# --------------------------------------------------------------------------- #
# Forward wrapper
# --------------------------------------------------------------------------- #
def max_mixture_prior_forward(pose, betas, means, precisions, nll_weights,
                              block_rows=128):
    """Pallas implementation of MaxMixturePrior.forward (use_merged=True).
    `betas` accepted for interface parity (unused, as in merged_log_likelihood)."""
    del betas
    pose = jnp.asarray(pose, jnp.float32)
    B, D = pose.shape
    M = means.shape[0]

    l_packed, c_packed, bias = pack_whitened_params(means, precisions, nll_weights, DPAD)

    def _round_up(a, b):
        return ((a + b - 1) // b) * b

    # Batch tile: multiple of 8 sublanes (caller value rounded up), and capped so the
    # grid has >= 2 steps whenever B > 8 -> both v7x TensorCores get work.
    b8 = _round_up(B, 8)
    tb = min(_round_up(max(block_rows, 8), 8), b8)
    if b8 > 8:
        tb = min(tb, max(8, _round_up(-(-b8 // 2), 8)))
    b_pad = _round_up(B, tb)

    x = pose
    if b_pad != B:
        # Pad rows are zeros -> finite log-likelihoods, sliced off below.
        x = jnp.zeros((b_pad, D), jnp.float32).at[:B].set(pose)

    # TODO(synk): for tiny batches (B ~ a few) the parameter DMA + launch overhead
    # dominates; a plain XLA einsum would be faster in that regime.
    grid = (b_pad // tb,)
    out = pl.pallas_call(
        gmm_prior_kernel,
        out_shape=jax.ShapeDtypeStruct((b_pad, 1), jnp.float32),
        grid=grid,
        in_specs=[
            pl.BlockSpec((tb, D), lambda i: (i, 0)),             # pose tile (pipelined)
            pl.BlockSpec((D, M * DPAD), lambda i: (0, 0)),       # Cholesky pack (resident)
            pl.BlockSpec((1, M * DPAD), lambda i: (0, 0)),       # mu@L row       (resident)
            pl.BlockSpec(memory_space=pltpu.MemorySpace.SMEM),   # -log(nll_w) scalars
        ],
        out_specs=pl.BlockSpec((tb, 1), lambda i: (i, 0)),
        compiler_params=pltpu.CompilerParams(
            dimension_semantics=("parallel",)),                  # shards tiles on v7x
    )(x, l_packed, c_packed, bias)

    return out[:B, 0]                        # (B,) like torch.min(..., dim=1).values


# --------------------------------------------------------------------------- #
# Synthetic GMM parameters (replaces the gmm_{:02d}.pkl load)
# --------------------------------------------------------------------------- #
def build_prior_params(num_gaussians=NUM_GAUSSIANS, dim=DIM, epsilon=1e-16):
    rng = np.random.RandomState(0)
    means = (0.1 * rng.randn(num_gaussians, dim)).astype(np.float64)

    # SPD covariances: 0.5*I + low-magnitude random Gram term.
    A = 0.05 * rng.randn(num_gaussians, dim, dim)
    covs = A @ A.transpose(0, 2, 1) / dim + 0.5 * np.eye(dim)[None, :, :]

    precisions = np.stack([np.linalg.inv(c) for c in covs])

    weights = rng.rand(num_gaussians)
    weights = weights / weights.sum()

    sqrdets = np.array([np.sqrt(np.linalg.det(c)) for c in covs])
    const = (2.0 * np.pi) ** (dim / 2.0)
    nll_weights = (weights / (const * (sqrdets / sqrdets.min())))[None, :]  # (1, M)

    return (
        jnp.asarray(means, dtype=jnp.float32),
        jnp.asarray(precisions, dtype=jnp.float32),
        jnp.asarray(nll_weights, dtype=jnp.float32),
    )


def reference_forward(pose, betas, means, precisions, nll_weights):
    """Pure-JAX reference mirroring merged_log_likelihood."""
    del betas
    diff = pose[:, None, :] - means[None, :, :]                       # (B, M, D)
    pd = jnp.einsum('mij,bmj->bmi', precisions, diff)                  # (B, M, D)
    quad = jnp.sum(pd * diff, axis=-1)                                 # (B, M)
    ll = 0.5 * quad - jnp.log(nll_weights)                             # (B, M)
    return jnp.min(ll, axis=1)                                         # (B,)


if __name__ == "__main__":
    key = jax.random.PRNGKey(0)
    k_pose, k_betas, k_pose2 = jax.random.split(key, 3)

    means, precisions, nll_weights = build_prior_params()

    # --- small-shape test, consistent with the module (batch=2, pose dim 69) ---
    B = 2
    pose = 0.3 * jax.random.normal(k_pose, (B, DIM), dtype=jnp.float32)
    betas = jax.random.normal(k_betas, (B, 10), dtype=jnp.float32)     # unused, API parity

    out = max_mixture_prior_forward(pose, betas, means, precisions, nll_weights)
    out = jax.block_until_ready(out)
    ref = reference_forward(pose, betas, means, precisions, nll_weights)
    if not np.allclose(np.asarray(out), np.asarray(ref), rtol=1e-4, atol=1e-3):
        raise AssertionError(f"mismatch (B=2): pallas={out} ref={ref}")

    # --- larger batch: default tiling (>=2 grid steps, exercises v7x cap + padding) ---
    B2 = 200
    pose2 = 0.3 * jax.random.normal(k_pose2, (B2, DIM), dtype=jnp.float32)
    ref2 = reference_forward(pose2, None, means, precisions, nll_weights)

    out2 = max_mixture_prior_forward(pose2, None, means, precisions, nll_weights)
    out2 = jax.block_until_ready(out2)
    if not np.allclose(np.asarray(out2), np.asarray(ref2), rtol=1e-4, atol=1e-3):
        raise AssertionError("mismatch (B=200, default tiling)")

    # --- non-multiple-of-8 block_rows (rounded up to 64), 4-step grid ---
    out3 = max_mixture_prior_forward(pose2, None, means, precisions, nll_weights,
                                     block_rows=60)
    out3 = jax.block_until_ready(out3)
    if not np.allclose(np.asarray(out3), np.asarray(ref2), rtol=1e-4, atol=1e-3):
        raise AssertionError("mismatch (B=200, block_rows=60)")

    print("KERNEL_OK")
</pallas_src>

<mosaic_0001>
module attributes {stable_mosaic.version = 11 : i64} {
  func.func @gmm_prior_kernel(%arg0: i32, %arg1: memref<8x69xf32, #tpu.memory_space<vmem>>, %arg2: memref<69x768xf32, #tpu.memory_space<vmem>>, %arg3: memref<1x768xf32, #tpu.memory_space<vmem>>, %arg4: memref<6xf32, #tpu.memory_space<smem>>, %arg5: memref<8x1xf32, #tpu.memory_space<vmem>>) attributes {dimension_semantics = [#tpu.dimension_semantics<parallel>], iteration_bounds = array<i64: 1>, scalar_prefetch = 0 : i64, scratch_operands = 0 : i64, tpu.core_type = #tpu.core_type<tc>, window_params = [{transform_indices = @transform_0, window_bounds = array<i64: 8, 69>}, {pipeline_mode = #tpu.pipeline_mode<synchronous>, transform_indices = @transform_1, window_bounds = array<i64: 69, 768>}, {pipeline_mode = #tpu.pipeline_mode<synchronous>, transform_indices = @transform_2, window_bounds = array<i64: 1, 768>}, {transform_indices = @transform_3, window_bounds = array<i64: 6>}, {transform_indices = @transform_4, window_bounds = array<i64: 8, 1>}]} {
    %c0 = arith.constant 0 : index
    %c0_0 = arith.constant 0 : index
    %0 = vector.load %arg1[%c0, %c0_0] : memref<8x69xf32, #tpu.memory_space<vmem>>, vector<8x69xf32>
    %c0_1 = arith.constant 0 : index
    %c0_2 = arith.constant 0 : index
    %1 = vector.load %arg2[%c0_1, %c0_2] : memref<69x768xf32, #tpu.memory_space<vmem>>, vector<69x256xf32>
    %cst = arith.constant dense<0.000000e+00> : vector<8x256xf32>
    %2 = tpu.matmul %0, %1, %cst {dimension_numbers = #tpu.dot_dimension_numbers<[1], [0], [0], [1], [0, 0, 1, 1], [], []>} : vector<8x69xf32>, vector<69x256xf32>, vector<8x256xf32> -> vector<8x256xf32>
    %c0_3 = arith.constant 0 : index
    %c0_4 = arith.constant 0 : index
    %3 = vector.load %arg3[%c0_3, %c0_4] : memref<1x768xf32, #tpu.memory_space<vmem>>, vector<1x256xf32>
    %4 = vector.broadcast %3 : vector<1x256xf32> to vector<8x256xf32>
    %5 = arith.subf %2, %4 : vector<8x256xf32>
    %6 = arith.mulf %5, %5 : vector<8x256xf32>
    %7 = vector.extract_strided_slice %6 {offsets = [0, 0], sizes = [8, 128], strides = [1, 1]} : vector<8x256xf32> to vector<8x128xf32>
    %cst_5 = arith.constant dense<0.000000e+00> : vector<8xf32>
    %8 = vector.multi_reduction <add>, %7, %cst_5 [1] : vector<8x128xf32> to vector<8xf32>
    %9 = vector.shape_cast %8 : vector<8xf32> to vector<8x1xf32>
    %cst_6 = arith.constant 5.000000e-01 : f32
    %10 = vector.broadcast %cst_6 : f32 to vector<8x1xf32>
    %11 = arith.mulf %10, %9 : vector<8x1xf32>
    %c0_7 = arith.constant 0 : index
    %12 = memref.load %arg4[%c0_7] : memref<6xf32, #tpu.memory_space<smem>>
    %13 = vector.broadcast %12 : f32 to vector<8x1xf32>
    %14 = arith.addf %11, %13 : vector<8x1xf32>
    %15 = vector.extract_strided_slice %6 {offsets = [0, 128], sizes = [8, 128], strides = [1, 1]} : vector<8x256xf32> to vector<8x128xf32>
    %cst_8 = arith.constant dense<0.000000e+00> : vector<8xf32>
    %16 = vector.multi_reduction <add>, %15, %cst_8 [1] : vector<8x128xf32> to vector<8xf32>
    %17 = vector.shape_cast %16 : vector<8xf32> to vector<8x1xf32>
    %cst_9 = arith.constant 5.000000e-01 : f32
    %18 = vector.broadcast %cst_9 : f32 to vector<8x1xf32>
    %19 = arith.mulf %18, %17 : vector<8x1xf32>
    %c1 = arith.constant 1 : index
    %20 = memref.load %arg4[%c1] : memref<6xf32, #tpu.memory_space<smem>>
    %21 = vector.broadcast %20 : f32 to vector<8x1xf32>
    %22 = arith.addf %19, %21 : vector<8x1xf32>
    %23 = arith.minimumf %14, %22 : vector<8x1xf32>
    %c0_10 = arith.constant 0 : index
    %c256 = arith.constant 256 : index
    %24 = vector.load %arg2[%c0_10, %c256] : memref<69x768xf32, #tpu.memory_space<vmem>>, vector<69x256xf32>
    %cst_11 = arith.constant dense<0.000000e+00> : vector<8x256xf32>
    %25 = tpu.matmul %0, %24, %cst_11 {dimension_numbers = #tpu.dot_dimension_numbers<[1], [0], [0], [1], [0, 0, 1, 1], [], []>} : vector<8x69xf32>, vector<69x256xf32>, vector<8x256xf32> -> vector<8x256xf32>
    %c0_12 = arith.constant 0 : index
    %c256_13 = arith.constant 256 : index
    %26 = vector.load %arg3[%c0_12, %c256_13] : memref<1x768xf32, #tpu.memory_space<vmem>>, vector<1x256xf32>
    %27 = vector.broadcast %26 : vector<1x256xf32> to vector<8x256xf32>
    %28 = arith.subf %25, %27 : vector<8x256xf32>
    %29 = arith.mulf %28, %28 : vector<8x256xf32>
    %30 = vector.extract_strided_slice %29 {offsets = [0, 0], sizes = [8, 128], strides = [1, 1]} : vector<8x256xf32> to vector<8x128xf32>
    %cst_14 = arith.constant dense<0.000000e+00> : vector<8xf32>
    %31 = vector.multi_reduction <add>, %30, %cst_14 [1] : vector<8x128xf32> to vector<8xf32>
    %32 = vector.shape_cast %31 : vector<8xf32> to vector<8x1xf32>
    %cst_15 = arith.constant 5.000000e-01 : f32
    %33 = vector.broadcast %cst_15 : f32 to vector<8x1xf32>
    %34 = arith.mulf %33, %32 : vector<8x1xf32>
    %c2 = arith.constant 2 : index
    %35 = memref.load %arg4[%c2] : memref<6xf32, #tpu.memory_space<smem>>
    %36 = vector.broadcast %35 : f32 to vector<8x1xf32>
    %37 = arith.addf %34, %36 : vector<8x1xf32>
    %38 = vector.extract_strided_slice %29 {offsets = [0, 128], sizes = [8, 128], strides = [1, 1]} : vector<8x256xf32> to vector<8x128xf32>
    %cst_16 = arith.constant dense<0.000000e+00> : vector<8xf32>
    %39 = vector.multi_reduction <add>, %38, %cst_16 [1] : vector<8x128xf32> to vector<8xf32>
    %40 = vector.shape_cast %39 : vector<8xf32> to vector<8x1xf32>
    %cst_17 = arith.constant 5.000000e-01 : f32
    %41 = vector.broadcast %cst_17 : f32 to vector<8x1xf32>
    %42 = arith.mulf %41, %40 : vector<8x1xf32>
    %c3 = arith.constant 3 : index
    %43 = memref.load %arg4[%c3] : memref<6xf32, #tpu.memory_space<smem>>
    %44 = vector.broadcast %43 : f32 to vector<8x1xf32>
    %45 = arith.addf %42, %44 : vector<8x1xf32>
    %46 = arith.minimumf %23, %37 : vector<8x1xf32>
    %47 = arith.minimumf %46, %45 : vector<8x1xf32>
    %c0_18 = arith.constant 0 : index
    %c512 = arith.constant 512 : index
    %48 = vector.load %arg2[%c0_18, %c512] : memref<69x768xf32, #tpu.memory_space<vmem>>, vector<69x256xf32>
    %cst_19 = arith.constant dense<0.000000e+00> : vector<8x256xf32>
    %49 = tpu.matmul %0, %48, %cst_19 {dimension_numbers = #tpu.dot_dimension_numbers<[1], [0], [0], [1], [0, 0, 1, 1], [], []>} : vector<8x69xf32>, vector<69x256xf32>, vector<8x256xf32> -> vector<8x256xf32>
    %c0_20 = arith.constant 0 : index
    %c512_21 = arith.constant 512 : index
    %50 = vector.load %arg3[%c0_20, %c512_21] : memref<1x768xf32, #tpu.memory_space<vmem>>, vector<1x256xf32>
    %51 = vector.broadcast %50 : vector<1x256xf32> to vector<8x256xf32>
    %52 = arith.subf %49, %51 : vector<8x256xf32>
    %53 = arith.mulf %52, %52 : vector<8x256xf32>
    %54 = vector.extract_strided_slice %53 {offsets = [0, 0], sizes = [8, 128], strides = [1, 1]} : vector<8x256xf32> to vector<8x128xf32>
    %cst_22 = arith.constant dense<0.000000e+00> : vector<8xf32>
    %55 = vector.multi_reduction <add>, %54, %cst_22 [1] : vector<8x128xf32> to vector<8xf32>
    %56 = vector.shape_cast %55 : vector<8xf32> to vector<8x1xf32>
    %cst_23 = arith.constant 5.000000e-01 : f32
    %57 = vector.broadcast %cst_23 : f32 to vector<8x1xf32>
    %58 = arith.mulf %57, %56 : vector<8x1xf32>
    %c4 = arith.constant 4 : index
    %59 = memref.load %arg4[%c4] : memref<6xf32, #tpu.memory_space<smem>>
    %60 = vector.broadcast %59 : f32 to vector<8x1xf32>
    %61 = arith.addf %58, %60 : vector<8x1xf32>
    %62 = vector.extract_strided_slice %53 {offsets = [0, 128], sizes = [8, 128], strides = [1, 1]} : vector<8x256xf32> to vector<8x128xf32>
    %cst_24 = arith.constant dense<0.000000e+00> : vector<8xf32>
    %63 = vector.multi_reduction <add>, %62, %cst_24 [1] : vector<8x128xf32> to vector<8xf32>
    %64 = vector.shape_cast %63 : vector<8xf32> to vector<8x1xf32>
    %cst_25 = arith.constant 5.000000e-01 : f32
    %65 = vector.broadcast %cst_25 : f32 to vector<8x1xf32>
    %66 = arith.mulf %65, %64 : vector<8x1xf32>
    %c5 = arith.constant 5 : index
    %67 = memref.load %arg4[%c5] : memref<6xf32, #tpu.memory_space<smem>>
    %68 = vector.broadcast %67 : f32 to vector<8x1xf32>
    %69 = arith.addf %66, %68 : vector<8x1xf32>
    %70 = arith.minimumf %47, %61 : vector<8x1xf32>
    %71 = arith.minimumf %70, %69 : vector<8x1xf32>
    %c0_26 = arith.constant 0 : index
    %c0_27 = arith.constant 0 : index
    %72 = vector.load %arg5[%c0_26, %c0_27] : memref<8x1xf32, #tpu.memory_space<vmem>>, vector<8x1xf32>
    tpu.vector_store %arg5[%c0_26, %c0_27], %71 {strides = array<i32>} : memref<8x1xf32, #tpu.memory_space<vmem>>, vector<8x1xf32>,
    return
  }
  func.func @transform_0(%arg0: i32) -> (i32, i32) {
    %c0_i32 = arith.constant 0 : i32
    %c0_i32_0 = arith.constant 0 : i32
    return %arg0, %c0_i32 : i32, i32
  }
  func.func @transform_1(%arg0: i32) -> (i32, i32) {
    %c0_i32 = arith.constant 0 : i32
    %c0_i32_0 = arith.constant 0 : i32
    %c0_i32_1 = arith.constant 0 : i32
    return %c0_i32, %c0_i32_0 : i32, i32
  }
  func.func @transform_2(%arg0: i32) -> (i32, i32) {
    %c0_i32 = arith.constant 0 : i32
    %c0_i32_0 = arith.constant 0 : i32
    %c0_i32_1 = arith.constant 0 : i32
    return %c0_i32, %c0_i32_0 : i32, i32
  }
  func.func @transform_3(%arg0: i32) -> i32 {
    %c0_i32 = arith.constant 0 : i32
    %c0_i32_0 = arith.constant 0 : i32
    return %c0_i32 : i32
  }
  func.func @transform_4(%arg0: i32) -> (i32, i32) {
    %c0_i32 = arith.constant 0 : i32
    %c0_i32_0 = arith.constant 0 : i32
    return %arg0, %c0_i32 : i32, i32
  }
}

</mosaic_0001>

<llo_original>
// kernel: tpu_custom_call.1
$region0: #{tpu_custom_call.1}
  #allocation0 [shape = 'u32[]', space=smem, size = 0x4, offset = 0x4, fixed_abs, tag = 'smem constant byte address 0x4 - core index']
  #allocation1 [shape = 'u32[144,128]{1,0:T(1,128)}', space=vmem, size = 0x12000, scoped, tag = 'internal scratch']
  %s0 = inlined_call_operand.hbm [shape: f32[8,69], index: 0, kind: input, shape index: {}]
  %s1 = inlined_call_operand.hbm [shape: f32[69,768], index: 1, kind: input, shape index: {}]
  %s2 = inlined_call_operand.vmem [shape: f32[1,768], index: 2, kind: input, shape index: {}]
  %s3 = inlined_call_operand.vmem [shape: f32[6], index: 3, kind: input, shape index: {}]
  %s4 = inlined_call_operand.vmem [shape: f32[8,1], index: 4, kind: output, shape index: {}]
  %s5 = sld [smem:[#allocation0]]
  $region38: #{tpu_custom_call.1} parent=0
    _
  %s7 = ssub.s32 1, %s5
  %s8 = scalar_select 0, %s7, %s5
  $region1: #{tpu_custom_call.1} parent=0
    #allocation2 [shape = 'u8[4096]{0}', space=vmem, size = 0x1000, scoped, tag = 'input window, operand 0, single buffered']
    #allocation3 [shape = 's32[1]{0}', space=sflag, size = 0x4, scoped, tag = 'scoped memory for tpu_custom_call.1']
    #allocation4 [shape = 's32[1]{0}', space=sflag, size = 0x4, scoped, tag = 'scoped memory for tpu_custom_call.1']
    #allocation5 [shape = 'u8[221184]{0}', space=vmem, size = 0x36000, scoped, tag = 'input window, operand 1, single buffered']
    #allocation6 [shape = 's32[1]{0}', space=sflag, size = 0x4, scoped, tag = 'scoped memory for tpu_custom_call.1']
    #allocation7 [shape = 'u8[512]{0}', space=smem, size = 0x200, scoped, tag = 'input window, operand 3, single buffered']
    %9 = vsyncpa [#allocation3], 0
    %10 = vsyncpa [#allocation6], 0
    %11 = vsyncpa [#allocation4], 0
    // Predicated region
    $region2: #{tpu_custom_call.1} parent=1 // pred_check
      _
    $region3: #{tpu_custom_call.1} parent=1 // pred_check_branch
      %13 = sbr.rel (0) target = $region5
    $region4: #{tpu_custom_call.1} parent=1 // pred_region
      %s15 = ssub.s32 128, 128
      %16 = vsyncadd [#allocation3], %s15
      %s18 = sshll.u32 [#allocation2], 4
      %s19 = int_to_ptr.vmem [resolvable:$true] %s18
      %21 = dma.hbm_to_vmem [thread:$0]  %s0, 128, %s19, [#allocation3]
    $region5: #{tpu_custom_call.1} parent=1 // pred_fallthru
      _
    // Predicated region
    $region6: #{tpu_custom_call.1} parent=1 // pred_check
      _
    $region7: #{tpu_custom_call.1} parent=1 // pred_check_branch
      %23 = sbr.rel (0) target = $region9
    $region8: #{tpu_custom_call.1} parent=1 // pred_region
      %s25 = ssub.s32 6912, 6912
      %26 = vsyncadd [#allocation6], %s25
      %s27 = sshll.u32 [#allocation5], 4
      %s28 = int_to_ptr.vmem [resolvable:$true] %s27
      %33 = dma.hbm_to_vmem [thread:$0]  %s1, 6912, %s28, [#allocation6], 768, 768, 48
    $region9: #{tpu_custom_call.1} parent=1 // pred_fallthru
      _
    // Predicated region
    $region10: #{tpu_custom_call.1} parent=1 // pred_check
      _
    $region11: #{tpu_custom_call.1} parent=1 // pred_check_branch
      %35 = sbr.rel (0) target = $region13
    $region12: #{tpu_custom_call.1} parent=1 // pred_region
      _
    $region13: #{tpu_custom_call.1} parent=1 // pred_fallthru
      _
    // Predicated region
    $region14: #{tpu_custom_call.1} parent=1 // pred_check
      _
    $region15: #{tpu_custom_call.1} parent=1 // pred_check_branch
      %37 = sbr.rel (0) target = $region17
    $region16: #{tpu_custom_call.1} parent=1 // pred_region
      %s39 = ssub.s32 16, 16
      %40 = vsyncadd [#allocation4], %s39
      %s42 = sshll.u32 %s3, 4
      %s43 = int_to_ptr.vmem [resolvable:$true] %s42
      %45 = dma.vmem_to_smem %s43, 16, [#allocation7], [#allocation4]
    $region17: #{tpu_custom_call.1} parent=1 // pred_fallthru
      _
    // Predicated region
    $region18: #{tpu_custom_call.1} parent=1 // pred_check
      _
    $region19: #{tpu_custom_call.1} parent=1 // pred_check_branch
      %47 = sbr.rel (0) target = $region21
    $region20: #{tpu_custom_call.1} parent=1 // pred_region
      %48 = dma.done [#allocation3], 128
    $region21: #{tpu_custom_call.1} parent=1 // pred_fallthru
      _
    // Predicated region
    $region22: #{tpu_custom_call.1} parent=1 // pred_check
      _
    $region23: #{tpu_custom_call.1} parent=1 // pred_check_branch
      %50 = sbr.rel (0) target = $region25
    $region24: #{tpu_custom_call.1} parent=1 // pred_region
      %51 = dma.done [#allocation6], 6912
    $region25: #{tpu_custom_call.1} parent=1 // pred_fallthru
      _
    // Predicated region
    $region26: #{tpu_custom_call.1} parent=1 // pred_check
      _
    $region27: #{tpu_custom_call.1} parent=1 // pred_check_branch
      %53 = sbr.rel (0) target = $region29
    $region28: #{tpu_custom_call.1} parent=1 // pred_region
      %54 = dma.done [#allocation4], 16
    $region29: #{tpu_custom_call.1} parent=1 // pred_fallthru
      _
    %55 = sfence
    %v56 = vld [vmem:[#allocation2] sm:$0xff]
    %v57 = vld [vmem:[#allocation5] sm:$0xff]
    %v58 = vld [vmem:[#allocation5 + $0x8] sm:$0xff]
    %v59 = vld [vmem:[#allocation5 + $0x30] sm:$0xff]
    %v60 = vld [vmem:[#allocation5 + $0x38] sm:$0xff]
    %v61 = vld [vmem:[#allocation5 + $0x60] sm:$0xff]
    %v62 = vld [vmem:[#allocation5 + $0x68] sm:$0xff]
    %v63 = vld [vmem:[#allocation5 + $0x90] sm:$0xff]
    %v64 = vld [vmem:[#allocation5 + $0x98] sm:$0xff]
    %v65 = vld [vmem:[#allocation5 + $0xc0] sm:$0xff]
    %v66 = vld [vmem:[#allocation5 + $0xc8] sm:$0xff]
    %v67 = vld [vmem:[#allocation5 + $0xf0] sm:$0xff]
    %v68 = vld [vmem:[#allocation5 + $0xf8] sm:$0xff]
    %v69 = vld [vmem:[#allocation5 + $0x120] sm:$0xff]
    %v70 = vld [vmem:[#allocation5 + $0x128] sm:$0xff]
    %v71 = vld [vmem:[#allocation5 + $0x150] sm:$0xff]
    %v72 = vld [vmem:[#allocation5 + $0x158] sm:$0xff]
    %v73 = vld [vmem:[#allocation5 + $0x180] sm:$0x1f]
    %v74 = vld [vmem:[#allocation5 + $0x188] sm:$0x1f]
    %vm75 = vcmask 564224
    %v77 = vsel %vm75, %v56, 0
    %vm79 = vcmask 1044480
    %v81 = vsel %vm79, %v73, 0
    %v84 = vsel %vm79, %v74, 0
    %86 = vmatprep.subr.mxu0 %v58
    %87 = vmatpush1.msra.mxu0 %v57
    %88 = vmatprep.subr.mxu0 %v60
    %89 = vmatpush1.msra.mxu0 %v59
    %90 = vmatprep.subr.mxu0 %v62
    %91 = vmatpush1.msra.mxu0 %v61
    %92 = vmatprep.subr.mxu0 %v64
    %93 = vmatpush1.msra.mxu0 %v63
    %94 = vmatprep.subr.mxu0 %v66
    %95 = vmatpush1.msra.mxu0 %v65
    %96 = vmatprep.subr.mxu0 %v68
    %97 = vmatpush1.msra.mxu0 %v67
    %98 = vmatprep.subr.mxu0 %v70
    %99 = vmatpush1.msra.mxu0 %v69
    %100 = vmatprep.subr.mxu0 %v72
    %101 = vmatpush1.msra.mxu0 %v71
    %102 = vmatprep.subr.mxu0 %v84
    %103 = vmatpush1.msra.mxu0 %v81
    %104 = vmatprep.subr.mxu0 0.0
    %105 = vmatpush1.msra.mxu0 0.0
    %106 = vmatprep.subr.mxu0 0.0
    %107 = vmatpush1.msra.mxu0 0.0
    %108 = vmatprep.subr.mxu0 0.0
    %109 = vmatpush1.msra.mxu0 0.0
    %110 = vmatprep.subr.mxu0 0.0
    %111 = vmatpush1.msra.mxu0 0.0
    %112 = vmatprep.subr.mxu0 0.0
    %113 = vmatpush1.msra.mxu0 0.0
    %114 = vmatprep.subr.mxu0 0.0
    %115 = vmatpush1.msra.mxu0 0.0
    %116 = vmatprep.subr.mxu0 0.0
    %117 = vmatpush1.msra.mxu0 0.0
    %118 = vmatprep.subr.mxu0 0.0
    %119 = vmatpush1.msra.mxu0 0.0
    %120 = vmatprep.subr.mxu0 0.0
    %121 = vmatpush1.msra.mxu0 0.0
    %122 = vmatprep.subr.mxu0 0.0
    %123 = vmatpush1.msra.mxu0 0.0
    %124 = vmatprep.subr.mxu0 0.0
    %125 = vmatpush1.msra.mxu0 0.0
    %126 = vmatprep.subr.mxu0 0.0
    %127 = vmatpush1.msra.mxu0 0.0
    %128 = vmatprep.subr.mxu0 0.0
    %129 = vmatpush1.msra.mxu0 0.0
    %130 = vmatprep.subr.mxu0 0.0
    %131 = vmatpush1.msra.mxu0 0.0
    %132 = vmatprep.subr.mxu0 0.0
    %133 = vmatpush1.msra.mxu0 0.0
    %134 = vmatprep.subr.mxu0 0.0
    %135 = vmatpush1.msra.mxu0 0.0
    %136 = vmatprep.subr.mxu0 0.0
    %137 = vmatpush1.msra.mxu0 0.0
    %138 = vmatprep.subr.mxu0 0.0
    %139 = vmatpush1.msra.mxu0 0.0
    %140 = vmatprep.subr.mxu0 0.0
    %141 = vmatpush1.msra.mxu0 0.0
    %142 = vmatprep.subr.mxu0 0.0
    %143 = vmatpush1.msra.mxu0 0.0
    %144 = vmatprep.subr.mxu0 0.0
    %145 = vmatpush1.msra.mxu0 0.0
    %146 = vmatprep.subr.mxu0 0.0
    %147 = vmatpush1.msra.mxu0 0.0
    %148 = vmatprep.subr.mxu0 0.0
    %149 = vmatpush1.msra.mxu0 0.0
    %150 = vmatprep.mubr.f32.mxu0 0.0
    %151 = vmatmul.mubr.f32.gmra.mrb[0].mxu0 %v77
    %v152 = vpop.f32.mrb[0].mxu0
    %v153 = vadd.f32 0.0, %v152
    %v154 = vpop.f32.mrb[0].mxu0
    %v155 = vadd.f32 0.0, %v154
    %156 = vdwg.mxu0
    %v157 = vld [vmem:[%s2] sm:$0x3]
    %v159 = vlaneseq
    %v160 = vshrl.u32 %v159, 7
    %v161 = vsub.s32 0, %v160
    %v162 = vrot.slane %v157, %v161
    %v163 = vlaneseq
    %v164 = vshrl.u32 %v163, 7
    %v165 = vsub.s32 1, %v164
    %v166 = vrot.slane %v157, %v165
    %v169 = vsub.f32 %v153, %v162
    %v170 = vsub.f32 %v155, %v166
    %v171 = vmul.f32 %v169, %v169
    %v172 = vmul.f32 %v170, %v170
    %173 = vadd.xlane.f32.xlu0 %v171
    %v174 = vpop.xlane.xlu0 %173
    %v175 = vmul.f32 %v174, 0.5
    %s176 = sld [smem:[#allocation7]]
    %v177 = vstv %s176
    %v178 = vadd.f32 %v175, %v177
    %179 = vadd.xlane.f32.xlu0 %v172
    %v180 = vpop.xlane.xlu0 %179
    %v181 = vmul.f32 %v180, 0.5
    %s182 = sld [smem:[#allocation7 + $0x1]]
    %v183 = vstv %s182
    %v184 = vadd.f32 %v181, %v183
    %v185 = vmin.f32 %v178, %v184
    %v186 = vld [vmem:[#allocation5 + $0x10] sm:$0xff]
    %v187 = vld [vmem:[#allocation5 + $0x18] sm:$0xff]
    %v188 = vld [vmem:[#allocation5 + $0x40] sm:$0xff]
    %v189 = vld [vmem:[#allocation5 + $0x48] sm:$0xff]
    %v190 = vld [vmem:[#allocation5 + $0x70] sm:$0xff]
    %v191 = vld [vmem:[#allocation5 + $0x78] sm:$0xff]
    %v192 = vld [vmem:[#allocation5 + $0xa0] sm:$0xff]
    %v193 = vld [vmem:[#allocation5 + $0xa8] sm:$0xff]
    %v194 = vld [vmem:[#allocation5 + $0xd0] sm:$0xff]
    %v195 = vld [vmem:[#allocation5 + $0xd8] sm:$0xff]
    %v196 = vld [vmem:[#allocation5 + $0x100] sm:$0xff]
    %v197 = vld [vmem:[#allocation5 + $0x108] sm:$0xff]
    %v198 = vld [vmem:[#allocation5 + $0x130] sm:$0xff]
    %v199 = vld [vmem:[#allocation5 + $0x138] sm:$0xff]
    %v200 = vld [vmem:[#allocation5 + $0x160] sm:$0xff]
    %v201 = vld [vmem:[#allocation5 + $0x168] sm:$0xff]
    %v202 = vld [vmem:[#allocation5 + $0x190] sm:$0x1f]
    %v203 = vld [vmem:[#allocation5 + $0x198] sm:$0x1f]
    %v205 = vsel %vm79, %v202, 0
    %v208 = vsel %vm79, %v203, 0
    %210 = vmatprep.subr.mxu0 %v187
    %211 = vmatpush1.msra.mxu0 %v186
    %212 = vmatprep.subr.mxu0 %v189
    %213 = vmatpush1.msra.mxu0 %v188
    %214 = vmatprep.subr.mxu0 %v191
    %215 = vmatpush1.msra.mxu0 %v190
    %216 = vmatprep.subr.mxu0 %v193
    %217 = vmatpush1.msra.mxu0 %v192
    %218 = vmatprep.subr.mxu0 %v195
    %219 = vmatpush1.msra.mxu0 %v194
    %220 = vmatprep.subr.mxu0 %v197
    %221 = vmatpush1.msra.mxu0 %v196
    %222 = vmatprep.subr.mxu0 %v199
    %223 = vmatpush1.msra.mxu0 %v198
    %224 = vmatprep.subr.mxu0 %v201
    %225 = vmatpush1.msra.mxu0 %v200
    %226 = vmatprep.subr.mxu0 %v208
    %227 = vmatpush1.msra.mxu0 %v205
    %228 = vmatprep.subr.mxu0 0.0
    %229 = vmatpush1.msra.mxu0 0.0
    %230 = vmatprep.subr.mxu0 0.0
    %231 = vmatpush1.msra.mxu0 0.0
    %232 = vmatprep.subr.mxu0 0.0
    %233 = vmatpush1.msra.mxu0 0.0
    %234 = vmatprep.subr.mxu0 0.0
    %235 = vmatpush1.msra.mxu0 0.0
    %236 = vmatprep.subr.mxu0 0.0
    %237 = vmatpush1.msra.mxu0 0.0
    %238 = vmatprep.subr.mxu0 0.0
    %239 = vmatpush1.msra.mxu0 0.0
    %240 = vmatprep.subr.mxu0 0.0
    %241 = vmatpush1.msra.mxu0 0.0
    %242 = vmatprep.subr.mxu0 0.0
    %243 = vmatpush1.msra.mxu0 0.0
    %244 = vmatprep.subr.mxu0 0.0
    %245 = vmatpush1.msra.mxu0 0.0
    %246 = vmatprep.subr.mxu0 0.0
    %247 = vmatpush1.msra.mxu0 0.0
    %248 = vmatprep.subr.mxu0 0.0
    %249 = vmatpush1.msra.mxu0 0.0
    %250 = vmatprep.subr.mxu0 0.0
    %251 = vmatpush1.msra.mxu0 0.0
    %252 = vmatprep.subr.mxu0 0.0
    %253 = vmatpush1.msra.mxu0 0.0
    %254 = vmatprep.subr.mxu0 0.0
    %255 = vmatpush1.msra.mxu0 0.0
    %256 = vmatprep.subr.mxu0 0.0
    %257 = vmatpush1.msra.mxu0 0.0
    %258 = vmatprep.subr.mxu0 0.0
    %259 = vmatpush1.msra.mxu0 0.0
    %260 = vmatprep.subr.mxu0 0.0
    %261 = vmatpush1.msra.mxu0 0.0
    %262 = vmatprep.subr.mxu0 0.0
    %263 = vmatpush1.msra.mxu0 0.0
    %264 = vmatprep.subr.mxu0 0.0
    %265 = vmatpush1.msra.mxu0 0.0
    %266 = vmatprep.subr.mxu0 0.0
    %267 = vmatpush1.msra.mxu0 0.0
    %268 = vmatprep.subr.mxu0 0.0
    %269 = vmatpush1.msra.mxu0 0.0
    %270 = vmatprep.subr.mxu0 0.0
    %271 = vmatpush1.msra.mxu0 0.0
    %272 = vmatprep.subr.mxu0 0.0
    %273 = vmatpush1.msra.mxu0 0.0
    %274 = vmatprep.mubr.f32.mxu0 0.0
    %275 = vmatmul.mubr.f32.gmra.mrb[0].mxu0 %v77
    %v276 = vpop.f32.mrb[0].mxu0
    %v277 = vadd.f32 0.0, %v276
    %v278 = vpop.f32.mrb[0].mxu0
    %v279 = vadd.f32 0.0, %v278
    %280 = vdwg.mxu0
    %v281 = vld [vmem:[%s2 + $0x2] sm:$0x3]
    %v283 = vlaneseq
    %v284 = vshrl.u32 %v283, 7
    %v285 = vsub.s32 0, %v284
    %v286 = vrot.slane %v281, %v285
    %v287 = vlaneseq
    %v288 = vshrl.u32 %v287, 7
    %v289 = vsub.s32 1, %v288
    %v290 = vrot.slane %v281, %v289
    %v293 = vsub.f32 %v277, %v286
    %v294 = vsub.f32 %v279, %v290
    %v295 = vmul.f32 %v293, %v293
    %v296 = vmul.f32 %v294, %v294
    %297 = vadd.xlane.f32.xlu0 %v295
    %v298 = vpop.xlane.xlu0 %297
    %v299 = vmul.f32 %v298, 0.5
    %s300 = sld [smem:[#allocation7 + $0x2]]
    %v301 = vstv %s300
    %v302 = vadd.f32 %v299, %v301
    %303 = vadd.xlane.f32.xlu0 %v296
    %v304 = vpop.xlane.xlu0 %303
    %v305 = vmul.f32 %v304, 0.5
    %s306 = sld [smem:[#allocation7 + $0x3]]
    %v307 = vstv %s306
    %v308 = vadd.f32 %v305, %v307
    %v309 = vmin.f32 %v185, %v302
    %v310 = vmin.f32 %v309, %v308
    %v311 = vld [vmem:[#allocation5 + $0x20] sm:$0xff]
    %v312 = vld [vmem:[#allocation5 + $0x28] sm:$0xff]
    %v313 = vld [vmem:[#allocation5 + $0x50] sm:$0xff]
    %v314 = vld [vmem:[#allocation5 + $0x58] sm:$0xff]
    %v315 = vld [vmem:[#allocation5 + $0x80] sm:$0xff]
    %v316 = vld [vmem:[#allocation5 + $0x88] sm:$0xff]
    %v317 = vld [vmem:[#allocation5 + $0xb0] sm:$0xff]
    %v318 = vld [vmem:[#allocation5 + $0xb8] sm:$0xff]
    %v319 = vld [vmem:[#allocation5 + $0xe0] sm:$0xff]
    %v320 = vld [vmem:[#allocation5 + $0xe8] sm:$0xff]
    %v321 = vld [vmem:[#allocation5 + $0x110] sm:$0xff]
    %v322 = vld [vmem:[#allocation5 + $0x118] sm:$0xff]
    %v323 = vld [vmem:[#allocation5 + $0x140] sm:$0xff]
    %v324 = vld [vmem:[#allocation5 + $0x148] sm:$0xff]
    %v325 = vld [vmem:[#allocation5 + $0x170] sm:$0xff]
    %v326 = vld [vmem:[#allocation5 + $0x178] sm:$0xff]
    %v327 = vld [vmem:[#allocation5 + $0x1a0] sm:$0x1f]
    %v328 = vld [vmem:[#allocation5 + $0x1a8] sm:$0x1f]
    %v330 = vsel %vm79, %v327, 0
    %v333 = vsel %vm79, %v328, 0
    %335 = vmatprep.subr.mxu0 %v312
    %336 = vmatpush1.msra.mxu0 %v311
    %337 = vmatprep.subr.mxu0 %v314
    %338 = vmatpush1.msra.mxu0 %v313
    %339 = vmatprep.subr.mxu0 %v316
    %340 = vmatpush1.msra.mxu0 %v315
    %341 = vmatprep.subr.mxu0 %v318
    %342 = vmatpush1.msra.mxu0 %v317
    %343 = vmatprep.subr.mxu0 %v320
    %344 = vmatpush1.msra.mxu0 %v319
    %345 = vmatprep.subr.mxu0 %v322
    %346 = vmatpush1.msra.mxu0 %v321
    %347 = vmatprep.subr.mxu0 %v324
    %348 = vmatpush1.msra.mxu0 %v323
    %349 = vmatprep.subr.mxu0 %v326
    %350 = vmatpush1.msra.mxu0 %v325
    %351 = vmatprep.subr.mxu0 %v333
    %352 = vmatpush1.msra.mxu0 %v330
    %353 = vmatprep.subr.mxu0 0.0
    %354 = vmatpush1.msra.mxu0 0.0
    %355 = vmatprep.subr.mxu0 0.0
    %356 = vmatpush1.msra.mxu0 0.0
    %357 = vmatprep.subr.mxu0 0.0
    %358 = vmatpush1.msra.mxu0 0.0
    %359 = vmatprep.subr.mxu0 0.0
    %360 = vmatpush1.msra.mxu0 0.0
    %361 = vmatprep.subr.mxu0 0.0
    %362 = vmatpush1.msra.mxu0 0.0
    %363 = vmatprep.subr.mxu0 0.0
    %364 = vmatpush1.msra.mxu0 0.0
    %365 = vmatprep.subr.mxu0 0.0
    %366 = vmatpush1.msra.mxu0 0.0
    %367 = vmatprep.subr.mxu0 0.0
    %368 = vmatpush1.msra.mxu0 0.0
    %369 = vmatprep.subr.mxu0 0.0
    %370 = vmatpush1.msra.mxu0 0.0
    %371 = vmatprep.subr.mxu0 0.0
    %372 = vmatpush1.msra.mxu0 0.0
    %373 = vmatprep.subr.mxu0 0.0
    %374 = vmatpush1.msra.mxu0 0.0
    %375 = vmatprep.subr.mxu0 0.0
    %376 = vmatpush1.msra.mxu0 0.0
    %377 = vmatprep.subr.mxu0 0.0
    %378 = vmatpush1.msra.mxu0 0.0
    %379 = vmatprep.subr.mxu0 0.0
    %380 = vmatpush1.msra.mxu0 0.0
    %381 = vmatprep.subr.mxu0 0.0
    %382 = vmatpush1.msra.mxu0 0.0
    %383 = vmatprep.subr.mxu0 0.0
    %384 = vmatpush1.msra.mxu0 0.0
    %385 = vmatprep.subr.mxu0 0.0
    %386 = vmatpush1.msra.mxu0 0.0
    %387 = vmatprep.subr.mxu0 0.0
    %388 = vmatpush1.msra.mxu0 0.0
    %389 = vmatprep.subr.mxu0 0.0
    %390 = vmatpush1.msra.mxu0 0.0
    %391 = vmatprep.subr.mxu0 0.0
    %392 = vmatpush1.msra.mxu0 0.0
    %393 = vmatprep.subr.mxu0 0.0
    %394 = vmatpush1.msra.mxu0 0.0
    %395 = vmatprep.subr.mxu0 0.0
    %396 = vmatpush1.msra.mxu0 0.0
    %397 = vmatprep.subr.mxu0 0.0
    %398 = vmatpush1.msra.mxu0 0.0
    %399 = vmatprep.mubr.f32.mxu0 0.0
    %400 = vmatmul.mubr.f32.gmra.mrb[0].mxu0 %v77
    %v401 = vpop.f32.mrb[0].mxu0
    %v402 = vadd.f32 0.0, %v401
    %v403 = vpop.f32.mrb[0].mxu0
    %v404 = vadd.f32 0.0, %v403
    %405 = vdwg.mxu0
    %v406 = vld [vmem:[%s2 + $0x4] sm:$0x3]
    %v408 = vlaneseq
    %v409 = vshrl.u32 %v408, 7
    %v410 = vsub.s32 0, %v409
    %v411 = vrot.slane %v406, %v410
    %v412 = vlaneseq
    %v413 = vshrl.u32 %v412, 7
    %v414 = vsub.s32 1, %v413
    %v415 = vrot.slane %v406, %v414
    %v418 = vsub.f32 %v402, %v411
    %v419 = vsub.f32 %v404, %v415
    %v420 = vmul.f32 %v418, %v418
    %v421 = vmul.f32 %v419, %v419
    %422 = vadd.xlane.f32.xlu0 %v420
    %v423 = vpop.xlane.xlu0 %422
    %v424 = vmul.f32 %v423, 0.5
    %s425 = sld [smem:[#allocation7 + $0x4]]
    %v426 = vstv %s425
    %v427 = vadd.f32 %v424, %v426
    %428 = vadd.xlane.f32.xlu0 %v421
    %v429 = vpop.xlane.xlu0 %428
    %v430 = vmul.f32 %v429, 0.5
    %s431 = sld [smem:[#allocation7 + $0x5]]
    %v432 = vstv %s431
    %v433 = vadd.f32 %v430, %v432
    %v434 = vmin.f32 %v310, %v427
    %v435 = vmin.f32 %v434, %v433
    %vm436 = vcmask 7168
    %437 = vst.msk [vmem:[%s4] sm:$0xff] %vm436, %v435
    // Predicated region
    $region30: #{tpu_custom_call.1} parent=1 // pred_check
      _
    $region31: #{tpu_custom_call.1} parent=1 // pred_check_branch
      %439 = sbr.rel (0) target = $region33
    $region32: #{tpu_custom_call.1} parent=1 // pred_region
      _
    $region33: #{tpu_custom_call.1} parent=1 // pred_fallthru
      _
    // Predicated region
    $region34: #{tpu_custom_call.1} parent=1 // pred_check
      _
    $region35: #{tpu_custom_call.1} parent=1 // pred_check_branch
      %441 = sbr.rel (0) target = $region37
    $region36: #{tpu_custom_call.1} parent=1 // pred_region
      _
    $region37: #{tpu_custom_call.1} parent=1 // pred_fallthru
      _
    %442 = vsyncpa [#allocation3], 1
    %443 = vsyncpa [#allocation6], 1
    %444 = vsyncpa [#allocation4], 1

</llo_original>
